<compile_context>
chip_gen: v6e
topology: v6e:2x2x1
jax: 0.10.0
libtpu: 0.0.40
codegen_flags: <defaults>
</compile_context>

<pallas_src>
import jax
import jax.numpy as jnp
from jax.experimental import pallas as pl
from jax.experimental.pallas import tpu as pltpu


LANE_PAD = 128  # pad hidden layers' out-features to a full vreg / MXU lane width


def _round_up(x, m):
    return ((x + m - 1) // m) * m


def _cdiv(a, b):
    return -(-a // b)


# ----------------------------- Pallas kernel ------------------------------ #

def actor_gaussian_kernel(ma_ref, s_ref, w1_ref, b1_ref, w2_ref, b2_ref,
                          w3_ref, b3_ref, out_ref):
    """Fused 3-layer MLP over one batch tile.

    Hidden layers are pre-padded so the fc1/fc2 matmuls are (tile_b, K) @ (K, 128)
    and lane-dense; the final mean_layer keeps its real (narrow) out-features so
    only action_dim columns are stored.  Matmuls may run in bf16 (wrapper casts)
    but always accumulate in f32; bias add + tanh + max_action scale stay f32.
    """
    max_action = ma_ref[0]                       # SMEM scalar

    s = s_ref[...]
    h1 = jnp.tanh(
        jnp.dot(s, w1_ref[...], preferred_element_type=jnp.float32) + b1_ref[...])
    h2 = jnp.tanh(
        jnp.dot(h1.astype(w2_ref.dtype), w2_ref[...],
                preferred_element_type=jnp.float32) + b2_ref[...])
    m = jnp.dot(h2.astype(w3_ref.dtype), w3_ref[...],
                preferred_element_type=jnp.float32) + b3_ref[...]
    out_ref[...] = (max_action * jnp.tanh(m)).astype(out_ref.dtype)


# --------------------------- parameter prep -------------------------------- #

def pad_actor_params(w1, b1, w2, b2, w3, b3, pad=LANE_PAD):
    """Zero-pad the hidden layers' out-features (and the next layer's in-features)
    to `pad` lanes.  tanh(0) = 0 and the matching weight rows are zero, so the
    padded hidden units contribute nothing.  The final layer's out-features are
    kept at their real width (action_dim) so the output store is narrow."""
    state_dim, h1 = w1.shape
    h1b, h2 = w2.shape
    h2b, adim = w3.shape
    assert h1 == h1b and h2 == h2b
    f32 = jnp.float32
    w1p = jnp.zeros((state_dim, pad), f32).at[:, :h1].set(w1)
    b1p = jnp.zeros((1, pad), f32).at[:, :h1].set(b1)
    w2p = jnp.zeros((pad, pad), f32).at[:h1, :h2].set(w2)
    b2p = jnp.zeros((1, pad), f32).at[:, :h2].set(b2)
    w3p = jnp.zeros((pad, adim), f32).at[:h2, :].set(w3)   # narrow out-features
    b3p = jnp.asarray(b3, f32).reshape(1, adim)
    return w1p, b1p, w2p, b2p, w3p, b3p


# ------------------------------- wrapper ------------------------------------ #

def actor_gaussian_forward(s, padded_params, max_action, action_dim=None, *,
                           tile_b=4096, compute_dtype=jnp.bfloat16):
    """mean = max_action * tanh(mean_layer(tanh(fc2(tanh(fc1(s))))))."""
    w1, b1, w2, b2, w3, b3 = padded_params
    batch, state_dim = s.shape
    pad = w1.shape[1]
    adim = w3.shape[1]
    if action_dim is not None:
        assert action_dim == adim

    # --- batch tiling --------------------------------------------------------
    # sublane multiple depends on the streamed dtype (8 f32 / 16 bf16)
    sub = 8 * 4 // jnp.dtype(compute_dtype).itemsize
    tile_cap = _round_up(max(int(tile_b), sub), sub)
    tile_cap = min(tile_cap, 8192)           # VMEM guard (safe on v7x's 64 MiB)

    steps = max(1, _cdiv(batch, tile_cap))
    if steps < 2 and batch > sub:
        steps = 2                            # >=2 steps -> both TCs on v7x
    if steps > 1 and steps % 2:
        steps += 1                           # even step count balances the 2 TCs
    tile_b = _round_up(_cdiv(batch, steps), sub)
    batch_p = _round_up(batch, tile_b)
    grid = (batch_p // tile_b,)

    if batch_p != batch:
        s = jnp.pad(s, ((0, batch_p - batch), (0, 0)))

    # Stream activations/weights in compute_dtype (bf16 halves HBM traffic and
    # doubles MXU peak on v6e/v7x); biases stay f32 so bias+tanh run in f32.
    s_c = s.astype(compute_dtype)
    w1c, w2c, w3c = (w.astype(compute_dtype) for w in (w1, w2, w3))
    ma = jnp.asarray([max_action], dtype=jnp.float32)

    flops = 2 * batch_p * (state_dim * pad + pad * pad + pad * adim)
    transcendentals = batch_p * (2 * pad + adim)
    bytes_accessed = (
        int(s_c.size) * s_c.dtype.itemsize
        + sum(int(a.size) * a.dtype.itemsize for a in (w1c, w2c, w3c, b1, b2, b3))
        + batch_p * adim * 4)

    out_padded = pl.pallas_call(
        actor_gaussian_kernel,
        out_shape=jax.ShapeDtypeStruct((batch_p, adim), jnp.float32),
        grid=grid,
        in_specs=[
            pl.BlockSpec(memory_space=pltpu.MemorySpace.SMEM),      # max_action (1,)
            pl.BlockSpec((tile_b, state_dim), lambda i: (i, 0)),    # s tile streams
            pl.BlockSpec((state_dim, pad), lambda i: (0, 0)),       # w1 (VMEM-resident)
            pl.BlockSpec((1, pad), lambda i: (0, 0)),               # b1
            pl.BlockSpec((pad, pad), lambda i: (0, 0)),             # w2
            pl.BlockSpec((1, pad), lambda i: (0, 0)),               # b2
            pl.BlockSpec((pad, adim), lambda i: (0, 0)),            # w3 (narrow out)
            pl.BlockSpec((1, adim), lambda i: (0, 0)),              # b3
        ],
        out_specs=pl.BlockSpec((tile_b, adim), lambda i: (i, 0)),   # narrow store
        compiler_params=pltpu.CompilerParams(
            dimension_semantics=("parallel",),
            vmem_limit_bytes=32 * 1024 * 1024),
        cost_estimate=pl.CostEstimate(
            flops=flops, transcendentals=transcendentals,
            bytes_accessed=bytes_accessed),
    )(ma, s_c, w1c, b1, w2c, b2, w3c, b3)

    # strip batch padding back to the logical output (no lane slice needed)
    return out_padded[:batch]


# --------------------------- init helper (host) ----------------------------- #

def orthogonal(key, shape, gain=1.0):
    """Deterministic orthogonal init matching torch.nn.init.orthogonal_."""
    rows, cols = shape
    flat = jax.random.normal(key, (rows, cols), dtype=jnp.float32)
    if rows < cols:
        flat = flat.T
    q, r = jnp.linalg.qr(flat)
    d = jnp.sign(jnp.diag(r))
    d = jnp.where(d == 0, 1.0, d)
    q = q * d[None, :]
    if rows < cols:
        q = q.T
    return (gain * q).astype(jnp.float32)


# --------------------------------- main ------------------------------------- #

if __name__ == "__main__":
    # args consistent with Actor_Gaussian.__init__
    state_dim = 32
    hidden_width = 32
    action_dim_scale = 2
    action_dim = 4
    max_action = 2.0
    hidden2 = hidden_width * action_dim_scale

    key = jax.random.PRNGKey(0)
    k_s, k_s2, k1, k2, k3 = jax.random.split(key, 5)

    # Torch Linear weight is (out, in); we keep it transposed as (in, out) so the
    # kernel computes s @ W + b.  Orthogonal gains 1.0 / 1.0 / 0.01, biases zero.
    w1 = orthogonal(k1, (hidden_width, state_dim), gain=1.0).T     # (state_dim, hidden)
    w2 = orthogonal(k2, (hidden2, hidden_width), gain=1.0).T       # (hidden, hidden2)
    w3 = orthogonal(k3, (action_dim, hidden2), gain=0.01).T        # (hidden2, action_dim)
    b1 = jnp.zeros((1, hidden_width), jnp.float32)
    b2 = jnp.zeros((1, hidden2), jnp.float32)
    b3 = jnp.zeros((1, action_dim), jnp.float32)

    padded = pad_actor_params(w1, b1, w2, b2, w3, b3)

    def ref_forward(x):
        return max_action * jnp.tanh(
            jnp.tanh(jnp.tanh(x @ w1 + b1) @ w2 + b2) @ w3 + b3)

    # --- small batch, f32 streaming (single grid step), tight tolerance ---
    s_small = jax.random.normal(k_s, (8, state_dim), dtype=jnp.float32)
    out_small = jax.block_until_ready(
        actor_gaussian_forward(s_small, padded, max_action, action_dim,
                               compute_dtype=jnp.float32))
    assert out_small.shape == (8, action_dim)
    assert jnp.allclose(out_small, ref_forward(s_small), atol=1e-5, rtol=1e-5)

    # --- larger, non-multiple batch, f32 (multi-step grid + batch padding) ---
    s_big = jax.random.normal(k_s2, (300, state_dim), dtype=jnp.float32)
    out_big = jax.block_until_ready(
        actor_gaussian_forward(s_big, padded, max_action, action_dim,
                               tile_b=128, compute_dtype=jnp.float32))
    assert out_big.shape == (300, action_dim)
    assert jnp.allclose(out_big, ref_forward(s_big), atol=1e-5, rtol=1e-5)

    # --- default path: bf16 streaming (f32 MXU accumulation), looser tolerance ---
    out_bf16 = jax.block_until_ready(
        actor_gaussian_forward(s_big, padded, max_action, action_dim))
    assert out_bf16.shape == (300, action_dim)
    assert jnp.allclose(out_bf16, ref_forward(s_big), atol=5e-2, rtol=5e-2)

    # NOTE: get_dist() only wraps forward() with std = exp(log_std) (zeros at
    # init) and a Normal distribution object; the MLP above is the hot path.
    print("KERNEL_OK")
</pallas_src>

<mosaic_0001>
module attributes {stable_mosaic.version = 11 : i64} {
  func.func @actor_gaussian_kernel(%arg0: i32, %arg1: memref<1xf32, #tpu.memory_space<smem>>, %arg2: memref<8x32xf32, #tpu.memory_space<vmem>>, %arg3: memref<32x128xf32, #tpu.memory_space<vmem>>, %arg4: memref<1x128xf32, #tpu.memory_space<vmem>>, %arg5: memref<128x128xf32, #tpu.memory_space<vmem>>, %arg6: memref<1x128xf32, #tpu.memory_space<vmem>>, %arg7: memref<128x4xf32, #tpu.memory_space<vmem>>, %arg8: memref<1x4xf32, #tpu.memory_space<vmem>>, %arg9: memref<8x4xf32, #tpu.memory_space<vmem>>) attributes {dimension_semantics = [#tpu.dimension_semantics<parallel>], iteration_bounds = array<i64: 1>, scalar_prefetch = 0 : i64, scratch_operands = 0 : i64, tpu.core_type = #tpu.core_type<tc>, window_params = [{transform_indices = @transform_0, window_bounds = array<i64: 1>}, {transform_indices = @transform_1, window_bounds = array<i64: 8, 32>}, {pipeline_mode = #tpu.pipeline_mode<synchronous>, transform_indices = @transform_2, window_bounds = array<i64: 32, 128>}, {pipeline_mode = #tpu.pipeline_mode<synchronous>, transform_indices = @transform_3, window_bounds = array<i64: 1, 128>}, {pipeline_mode = #tpu.pipeline_mode<synchronous>, transform_indices = @transform_4, window_bounds = array<i64: 128, 128>}, {pipeline_mode = #tpu.pipeline_mode<synchronous>, transform_indices = @transform_5, window_bounds = array<i64: 1, 128>}, {pipeline_mode = #tpu.pipeline_mode<synchronous>, transform_indices = @transform_6, window_bounds = array<i64: 128, 4>}, {pipeline_mode = #tpu.pipeline_mode<synchronous>, transform_indices = @transform_7, window_bounds = array<i64: 1, 4>}, {transform_indices = @transform_8, window_bounds = array<i64: 8, 4>}]} {
    %c0 = arith.constant 0 : index
    %0 = memref.load %arg1[%c0] : memref<1xf32, #tpu.memory_space<smem>>
    %c0_0 = arith.constant 0 : index
    %c0_1 = arith.constant 0 : index
    %1 = vector.load %arg2[%c0_0, %c0_1] : memref<8x32xf32, #tpu.memory_space<vmem>>, vector<8x32xf32>
    %c0_2 = arith.constant 0 : index
    %c0_3 = arith.constant 0 : index
    %2 = vector.load %arg3[%c0_2, %c0_3] : memref<32x128xf32, #tpu.memory_space<vmem>>, vector<32x128xf32>
    %cst = arith.constant dense<0.000000e+00> : vector<8x128xf32>
    %3 = tpu.matmul %1, %2, %cst {dimension_numbers = #tpu.dot_dimension_numbers<[1], [0], [0], [1], [0, 0, 1, 1], [], []>} : vector<8x32xf32>, vector<32x128xf32>, vector<8x128xf32> -> vector<8x128xf32>
    %c0_4 = arith.constant 0 : index
    %c0_5 = arith.constant 0 : index
    %4 = vector.load %arg4[%c0_4, %c0_5] : memref<1x128xf32, #tpu.memory_space<vmem>>, vector<1x128xf32>
    %5 = vector.broadcast %4 : vector<1x128xf32> to vector<8x128xf32>
    %6 = arith.addf %3, %5 : vector<8x128xf32>
    %7 = math.tanh %6 : vector<8x128xf32>
    %c0_6 = arith.constant 0 : index
    %c0_7 = arith.constant 0 : index
    %8 = vector.load %arg5[%c0_6, %c0_7] : memref<128x128xf32, #tpu.memory_space<vmem>>, vector<128x128xf32>
    %cst_8 = arith.constant dense<0.000000e+00> : vector<8x128xf32>
    %9 = tpu.matmul %7, %8, %cst_8 {dimension_numbers = #tpu.dot_dimension_numbers<[1], [0], [0], [1], [0, 0, 1, 1], [], []>} : vector<8x128xf32>, vector<128x128xf32>, vector<8x128xf32> -> vector<8x128xf32>
    %c0_9 = arith.constant 0 : index
    %c0_10 = arith.constant 0 : index
    %10 = vector.load %arg6[%c0_9, %c0_10] : memref<1x128xf32, #tpu.memory_space<vmem>>, vector<1x128xf32>
    %11 = vector.broadcast %10 : vector<1x128xf32> to vector<8x128xf32>
    %12 = arith.addf %9, %11 : vector<8x128xf32>
    %13 = math.tanh %12 : vector<8x128xf32>
    %c0_11 = arith.constant 0 : index
    %c0_12 = arith.constant 0 : index
    %14 = vector.load %arg7[%c0_11, %c0_12] : memref<128x4xf32, #tpu.memory_space<vmem>>, vector<128x4xf32>
    %cst_13 = arith.constant dense<0.000000e+00> : vector<8x4xf32>
    %15 = tpu.matmul %13, %14, %cst_13 {dimension_numbers = #tpu.dot_dimension_numbers<[1], [0], [0], [1], [0, 0, 1, 1], [], []>} : vector<8x128xf32>, vector<128x4xf32>, vector<8x4xf32> -> vector<8x4xf32>
    %c0_14 = arith.constant 0 : index
    %c0_15 = arith.constant 0 : index
    %16 = vector.load %arg8[%c0_14, %c0_15] : memref<1x4xf32, #tpu.memory_space<vmem>>, vector<1x4xf32>
    %17 = vector.broadcast %16 : vector<1x4xf32> to vector<8x4xf32>
    %18 = arith.addf %15, %17 : vector<8x4xf32>
    %19 = math.tanh %18 : vector<8x4xf32>
    %20 = vector.broadcast %0 : f32 to vector<8x4xf32>
    %21 = arith.mulf %20, %19 : vector<8x4xf32>
    %c0_16 = arith.constant 0 : index
    %c0_17 = arith.constant 0 : index
    %22 = vector.load %arg9[%c0_16, %c0_17] : memref<8x4xf32, #tpu.memory_space<vmem>>, vector<8x4xf32>
    tpu.vector_store %arg9[%c0_16, %c0_17], %21 {strides = array<i32>} : memref<8x4xf32, #tpu.memory_space<vmem>>, vector<8x4xf32>,
    return
  }
  func.func @transform_0(%arg0: i32) -> i32 {
    %c0_i32 = arith.constant 0 : i32
    %c0_i32_0 = arith.constant 0 : i32
    return %c0_i32 : i32
  }
  func.func @transform_1(%arg0: i32) -> (i32, i32) {
    %c0_i32 = arith.constant 0 : i32
    %c0_i32_0 = arith.constant 0 : i32
    return %arg0, %c0_i32 : i32, i32
  }
  func.func @transform_2(%arg0: i32) -> (i32, i32) {
    %c0_i32 = arith.constant 0 : i32
    %c0_i32_0 = arith.constant 0 : i32
    %c0_i32_1 = arith.constant 0 : i32
    return %c0_i32, %c0_i32_0 : i32, i32
  }
  func.func @transform_3(%arg0: i32) -> (i32, i32) {
    %c0_i32 = arith.constant 0 : i32
    %c0_i32_0 = arith.constant 0 : i32
    %c0_i32_1 = arith.constant 0 : i32
    return %c0_i32, %c0_i32_0 : i32, i32
  }
  func.func @transform_4(%arg0: i32) -> (i32, i32) {
    %c0_i32 = arith.constant 0 : i32
    %c0_i32_0 = arith.constant 0 : i32
    %c0_i32_1 = arith.constant 0 : i32
    return %c0_i32, %c0_i32_0 : i32, i32
  }
  func.func @transform_5(%arg0: i32) -> (i32, i32) {
    %c0_i32 = arith.constant 0 : i32
    %c0_i32_0 = arith.constant 0 : i32
    %c0_i32_1 = arith.constant 0 : i32
    return %c0_i32, %c0_i32_0 : i32, i32
  }
  func.func @transform_6(%arg0: i32) -> (i32, i32) {
    %c0_i32 = arith.constant 0 : i32
    %c0_i32_0 = arith.constant 0 : i32
    %c0_i32_1 = arith.constant 0 : i32
    return %c0_i32, %c0_i32_0 : i32, i32
  }
  func.func @transform_7(%arg0: i32) -> (i32, i32) {
    %c0_i32 = arith.constant 0 : i32
    %c0_i32_0 = arith.constant 0 : i32
    %c0_i32_1 = arith.constant 0 : i32
    return %c0_i32, %c0_i32_0 : i32, i32
  }
  func.func @transform_8(%arg0: i32) -> (i32, i32) {
    %c0_i32 = arith.constant 0 : i32
    %c0_i32_0 = arith.constant 0 : i32
    return %arg0, %c0_i32 : i32, i32
  }
}

</mosaic_0001>

<llo_original>
// kernel: tpu_custom_call.1
$region0: #{tpu_custom_call.1}
  #allocation0 [shape = 'u32[]', space=smem, size = 0x4, offset = 0x4, fixed_abs, tag = 'smem constant byte address 0x4 - core index']
  #allocation1 [shape = 'u32[144,128]{1,0:T(1,128)}', space=vmem, size = 0x12000, scoped, tag = 'internal scratch']
  #allocation2 [shape = 'f32[1]{0:T(128)S(6)}', space=smem, size = 0x200, scoped, tag = 'scoped memory for tpu_custom_call.1']
  %s0 = inlined_call_operand.<no memory space> [shape: f32[1], index: 0, kind: input, shape index: {}]
  %s1 = inlined_call_operand.vmem [shape: f32[8,32], index: 1, kind: input, shape index: {}]
  %s2 = inlined_call_operand.hbm [shape: f32[32,128], index: 2, kind: input, shape index: {}]
  %s3 = inlined_call_operand.vmem [shape: f32[1,128], index: 3, kind: input, shape index: {}]
  %s4 = inlined_call_operand.vmem [shape: f32[128,128], index: 4, kind: input, shape index: {}]
  %s5 = inlined_call_operand.hbm [shape: f32[1,128], index: 5, kind: input, shape index: {}]
  %s6 = inlined_call_operand.vmem [shape: f32[128,4], index: 6, kind: input, shape index: {}]
  %s7 = inlined_call_operand.vmem [shape: f32[1,4], index: 7, kind: input, shape index: {}]
  %s8 = inlined_call_operand.vmem [shape: f32[8,4], index: 8, kind: output, shape index: {}]
  %s9 = sld [smem:[#allocation0]]
  $region50: #{tpu_custom_call.1} parent=0
    _
  %s11 = ssub.s32 1, %s9
  %s12 = scalar_select 0, %s11, %s9
  %13 = sst [smem:[#allocation2]] %s0
  $region1: #{tpu_custom_call.1} parent=0
    #allocation3 [shape = 'u8[16384]{0}', space=vmem, size = 0x4000, scoped, tag = 'input window, operand 2, single buffered']
    #allocation4 [shape = 's32[1]{0}', space=sflag, size = 0x4, scoped, tag = 'scoped memory for tpu_custom_call.1']
    #allocation5 [shape = 'u8[512]{0}', space=vmem, size = 0x400, scoped, tag = 'input window, operand 5, single buffered']
    #allocation6 [shape = 's32[1]{0}', space=sflag, size = 0x4, scoped, tag = 'scoped memory for tpu_custom_call.1']
    %14 = vsyncpa [#allocation4], 0
    %15 = vsyncpa [#allocation6], 0
    // Predicated region
    $region2: #{tpu_custom_call.1} parent=1 // pred_check
      _
    $region3: #{tpu_custom_call.1} parent=1 // pred_check_branch
      %17 = sbr.rel (0) target = $region5
    $region4: #{tpu_custom_call.1} parent=1 // pred_region
      _
    $region5: #{tpu_custom_call.1} parent=1 // pred_fallthru
      _
    // Predicated region
    $region6: #{tpu_custom_call.1} parent=1 // pred_check
      _
    $region7: #{tpu_custom_call.1} parent=1 // pred_check_branch
      %19 = sbr.rel (0) target = $region9
    $region8: #{tpu_custom_call.1} parent=1 // pred_region
      _
    $region9: #{tpu_custom_call.1} parent=1 // pred_fallthru
      _
    // Predicated region
    $region10: #{tpu_custom_call.1} parent=1 // pred_check
      _
    $region11: #{tpu_custom_call.1} parent=1 // pred_check_branch
      %21 = sbr.rel (0) target = $region13
    $region12: #{tpu_custom_call.1} parent=1 // pred_region
      %s23 = ssub.s32 512, 512
      %24 = vsyncadd [#allocation4], %s23
      %s25 = sshll.u32 [#allocation3], 4
      %s26 = int_to_ptr.vmem [resolvable:$true] %s25
      %31 = dma.hbm_to_vmem [thread:$0]  %s2, 512, %s26, [#allocation4], 128, 128, 8
    $region13: #{tpu_custom_call.1} parent=1 // pred_fallthru
      _
    // Predicated region
    $region14: #{tpu_custom_call.1} parent=1 // pred_check
      _
    $region15: #{tpu_custom_call.1} parent=1 // pred_check_branch
      %33 = sbr.rel (0) target = $region17
    $region16: #{tpu_custom_call.1} parent=1 // pred_region
      _
    $region17: #{tpu_custom_call.1} parent=1 // pred_fallthru
      _
    // Predicated region
    $region18: #{tpu_custom_call.1} parent=1 // pred_check
      _
    $region19: #{tpu_custom_call.1} parent=1 // pred_check_branch
      %35 = sbr.rel (0) target = $region21
    $region20: #{tpu_custom_call.1} parent=1 // pred_region
      _
    $region21: #{tpu_custom_call.1} parent=1 // pred_fallthru
      _
    // Predicated region
    $region22: #{tpu_custom_call.1} parent=1 // pred_check
      _
    $region23: #{tpu_custom_call.1} parent=1 // pred_check_branch
      %37 = sbr.rel (0) target = $region25
    $region24: #{tpu_custom_call.1} parent=1 // pred_region
      %s39 = ssub.s32 16, 16
      %40 = vsyncadd [#allocation6], %s39
      %s42 = sshll.u32 [#allocation5], 4
      %s43 = int_to_ptr.vmem [resolvable:$true] %s42
      %45 = dma.hbm_to_vmem [thread:$0]  %s5, 16, %s43, [#allocation6]
    $region25: #{tpu_custom_call.1} parent=1 // pred_fallthru
      _
    // Predicated region
    $region26: #{tpu_custom_call.1} parent=1 // pred_check
      _
    $region27: #{tpu_custom_call.1} parent=1 // pred_check_branch
      %47 = sbr.rel (0) target = $region29
    $region28: #{tpu_custom_call.1} parent=1 // pred_region
      _
    $region29: #{tpu_custom_call.1} parent=1 // pred_fallthru
      _
    // Predicated region
    $region30: #{tpu_custom_call.1} parent=1 // pred_check
      _
    $region31: #{tpu_custom_call.1} parent=1 // pred_check_branch
      %49 = sbr.rel (0) target = $region33
    $region32: #{tpu_custom_call.1} parent=1 // pred_region
      _
    $region33: #{tpu_custom_call.1} parent=1 // pred_fallthru
      _
    // Predicated region
    $region34: #{tpu_custom_call.1} parent=1 // pred_check
      _
    $region35: #{tpu_custom_call.1} parent=1 // pred_check_branch
      %51 = sbr.rel (0) target = $region37
    $region36: #{tpu_custom_call.1} parent=1 // pred_region
      %52 = dma.done [#allocation4], 512
    $region37: #{tpu_custom_call.1} parent=1 // pred_fallthru
      _
    // Predicated region
    $region38: #{tpu_custom_call.1} parent=1 // pred_check
      _
    $region39: #{tpu_custom_call.1} parent=1 // pred_check_branch
      %54 = sbr.rel (0) target = $region41
    $region40: #{tpu_custom_call.1} parent=1 // pred_region
      %55 = dma.done [#allocation6], 16
    $region41: #{tpu_custom_call.1} parent=1 // pred_fallthru
      _
    %s56 = sld [smem:[#allocation2]]
    %v57 = vld [vmem:[%s1] sm:$0xff]
    %v58 = vld [vmem:[#allocation3] sm:$0xff]
    %v59 = vld [vmem:[#allocation3 + $0x8] sm:$0xff]
    %v60 = vld [vmem:[#allocation3 + $0x10] sm:$0xff]
    %v61 = vld [vmem:[#allocation3 + $0x18] sm:$0xff]
    %v62 = vld [vmem:[%s3] sm:$0x1]
    %v64 = vlaneseq
    %v65 = vshrl.u32 %v64, 7
    %v66 = vsub.s32 0, %v65
    %v67 = vrot.slane %v62, %v66
    %vm69 = vcmask 261120
    %v71 = vsel %vm69, %v57, 0
    %73 = vmatprep.subr.mxu0 0.0
    %74 = vmatpush1.msra.mxu0 0.0
    %75 = vmatprep.subr.mxu0 0.0
    %76 = vmatpush1.msra.mxu0 0.0
    %77 = vmatprep.subr.mxu0 0.0
    %78 = vmatpush1.msra.mxu0 0.0
    %79 = vmatprep.subr.mxu0 0.0
    %80 = vmatpush1.msra.mxu0 0.0
    %81 = vmatprep.subr.mxu0 0.0
    %82 = vmatpush1.msra.mxu0 0.0
    %83 = vmatprep.subr.mxu0 0.0
    %84 = vmatpush1.msra.mxu0 0.0
    %85 = vmatprep.subr.mxu0 0.0
    %86 = vmatpush1.msra.mxu0 0.0
    %87 = vmatprep.subr.mxu0 0.0
    %88 = vmatpush1.msra.mxu0 0.0
    %89 = vmatprep.subr.mxu0 0.0
    %90 = vmatpush1.msra.mxu0 0.0
    %91 = vmatprep.subr.mxu0 0.0
    %92 = vmatpush1.msra.mxu0 0.0
    %93 = vmatprep.subr.mxu0 0.0
    %94 = vmatpush1.msra.mxu0 0.0
    %95 = vmatprep.subr.mxu0 0.0
    %96 = vmatpush1.msra.mxu0 0.0
    %97 = vmatprep.subr.mxu0 0.0
    %98 = vmatpush1.msra.mxu0 %v61
    %99 = vmatprep.subr.mxu0 0.0
    %100 = vmatpush1.msra.mxu0 %v60
    %101 = vmatprep.subr.mxu0 0.0
    %102 = vmatpush1.msra.mxu0 %v59
    %103 = vmatprep.subr.mxu0 0.0
    %104 = vmatpush1.msra.mxu0 %v58
    %105 = vmatprep.subr.mxu0 0.0
    %106 = vmatpush2.msra.mxu0 0.0
    %107 = vmatprep.subr.mxu0 0.0
    %108 = vmatpush2.msra.mxu0 0.0
    %109 = vmatprep.subr.mxu0 0.0
    %110 = vmatpush2.msra.mxu0 0.0
    %111 = vmatprep.subr.mxu0 0.0
    %112 = vmatpush2.msra.mxu0 0.0
    %113 = vmatprep.subr.mxu0 0.0
    %114 = vmatpush2.msra.mxu0 0.0
    %115 = vmatprep.subr.mxu0 0.0
    %116 = vmatpush2.msra.mxu0 0.0
    %117 = vmatprep.subr.mxu0 0.0
    %118 = vmatpush2.msra.mxu0 0.0
    %119 = vmatprep.subr.mxu0 0.0
    %120 = vmatpush2.msra.mxu0 0.0
    %121 = vmatprep.subr.mxu0 0.0
    %122 = vmatpush2.msra.mxu0 0.0
    %123 = vmatprep.subr.mxu0 0.0
    %124 = vmatpush2.msra.mxu0 0.0
    %125 = vmatprep.subr.mxu0 0.0
    %126 = vmatpush2.msra.mxu0 0.0
    %127 = vmatprep.subr.mxu0 0.0
    %128 = vmatpush2.msra.mxu0 0.0
    %129 = vmatprep.subr.mxu0 0.0
    %130 = vmatpush2.msra.mxu0 0.0
    %131 = vmatprep.subr.mxu0 0.0
    %132 = vmatpush2.msra.mxu0 0.0
    %133 = vmatprep.subr.mxu0 0.0
    %134 = vmatpush2.msra.mxu0 0.0
    %135 = vmatprep.subr.mxu0 0.0
    %136 = vmatpush2.msra.mxu0 0.0
    %137 = vmatprep.mubr.f32.mxu0 0.0
    %138 = vmatmul.mubr.f32.gmra.mxu0 %v71
    %v139 = vpop.f32.mrf.mxu0
    %v140 = vadd.f32 %v67, %v139
    %v141 = vpop.f32.mrf.mxu0
    %142 = vdwg.mxu0
    %v143 = vtanh.pop %v140
    %v144 = vld [vmem:[%s4] sm:$0xff]
    %v145 = vld [vmem:[%s4 + $0x8] sm:$0xff]
    %v146 = vld [vmem:[%s4 + $0x10] sm:$0xff]
    %v147 = vld [vmem:[%s4 + $0x18] sm:$0xff]
    %v148 = vld [vmem:[%s4 + $0x20] sm:$0xff]
    %v149 = vld [vmem:[%s4 + $0x28] sm:$0xff]
    %v150 = vld [vmem:[%s4 + $0x30] sm:$0xff]
    %v151 = vld [vmem:[%s4 + $0x38] sm:$0xff]
    %v152 = vld [vmem:[%s4 + $0x40] sm:$0xff]
    %v153 = vld [vmem:[%s4 + $0x48] sm:$0xff]
    %v154 = vld [vmem:[%s4 + $0x50] sm:$0xff]
    %v155 = vld [vmem:[%s4 + $0x58] sm:$0xff]
    %v156 = vld [vmem:[%s4 + $0x60] sm:$0xff]
    %v157 = vld [vmem:[%s4 + $0x68] sm:$0xff]
    %v158 = vld [vmem:[%s4 + $0x70] sm:$0xff]
    %v159 = vld [vmem:[%s4 + $0x78] sm:$0xff]
    %v160 = vld [vmem:[#allocation5] sm:$0x1]
    %v162 = vlaneseq
    %v163 = vshrl.u32 %v162, 7
    %v164 = vsub.s32 0, %v163
    %v165 = vrot.slane %v160, %v164
    %167 = vmatprep.subr.mxu0 0.0
    %168 = vmatpush1.msra.mxu0 %v159
    %169 = vmatprep.subr.mxu0 0.0
    %170 = vmatpush1.msra.mxu0 %v158
    %171 = vmatprep.subr.mxu0 0.0
    %172 = vmatpush1.msra.mxu0 %v157
    %173 = vmatprep.subr.mxu0 0.0
    %174 = vmatpush1.msra.mxu0 %v156
    %175 = vmatprep.subr.mxu0 0.0
    %176 = vmatpush1.msra.mxu0 %v155
    %177 = vmatprep.subr.mxu0 0.0
    %178 = vmatpush1.msra.mxu0 %v154
    %179 = vmatprep.subr.mxu0 0.0
    %180 = vmatpush1.msra.mxu0 %v153
    %181 = vmatprep.subr.mxu0 0.0
    %182 = vmatpush1.msra.mxu0 %v152
    %183 = vmatprep.subr.mxu0 0.0
    %184 = vmatpush1.msra.mxu0 %v151
    %185 = vmatprep.subr.mxu0 0.0
    %186 = vmatpush1.msra.mxu0 %v150
    %187 = vmatprep.subr.mxu0 0.0
    %188 = vmatpush1.msra.mxu0 %v149
    %189 = vmatprep.subr.mxu0 0.0
    %190 = vmatpush1.msra.mxu0 %v148
    %191 = vmatprep.subr.mxu0 0.0
    %192 = vmatpush1.msra.mxu0 %v147
    %193 = vmatprep.subr.mxu0 0.0
    %194 = vmatpush1.msra.mxu0 %v146
    %195 = vmatprep.subr.mxu0 0.0
    %196 = vmatpush1.msra.mxu0 %v145
    %197 = vmatprep.subr.mxu0 0.0
    %198 = vmatpush1.msra.mxu0 %v144
    %199 = vmatprep.subr.mxu0 0.0
    %200 = vmatpush2.msra.mxu0 0.0
    %201 = vmatprep.subr.mxu0 0.0
    %202 = vmatpush2.msra.mxu0 0.0
    %203 = vmatprep.subr.mxu0 0.0
    %204 = vmatpush2.msra.mxu0 0.0
    %205 = vmatprep.subr.mxu0 0.0
    %206 = vmatpush2.msra.mxu0 0.0
    %207 = vmatprep.subr.mxu0 0.0
    %208 = vmatpush2.msra.mxu0 0.0
    %209 = vmatprep.subr.mxu0 0.0
    %210 = vmatpush2.msra.mxu0 0.0
    %211 = vmatprep.subr.mxu0 0.0
    %212 = vmatpush2.msra.mxu0 0.0
    %213 = vmatprep.subr.mxu0 0.0
    %214 = vmatpush2.msra.mxu0 0.0
    %215 = vmatprep.subr.mxu0 0.0
    %216 = vmatpush2.msra.mxu0 0.0
    %217 = vmatprep.subr.mxu0 0.0
    %218 = vmatpush2.msra.mxu0 0.0
    %219 = vmatprep.subr.mxu0 0.0
    %220 = vmatpush2.msra.mxu0 0.0
    %221 = vmatprep.subr.mxu0 0.0
    %222 = vmatpush2.msra.mxu0 0.0
    %223 = vmatprep.subr.mxu0 0.0
    %224 = vmatpush2.msra.mxu0 0.0
    %225 = vmatprep.subr.mxu0 0.0
    %226 = vmatpush2.msra.mxu0 0.0
    %227 = vmatprep.subr.mxu0 0.0
    %228 = vmatpush2.msra.mxu0 0.0
    %229 = vmatprep.subr.mxu0 0.0
    %230 = vmatpush2.msra.mxu0 0.0
    %231 = vmatprep.mubr.f32.mxu0 0.0
    %232 = vmatmul.mubr.f32.gmra.mxu0 %v143
    %v233 = vpop.f32.mrf.mxu0
    %v234 = vadd.f32 %v165, %v233
    %v235 = vpop.f32.mrf.mxu0
    %236 = vdwg.mxu0
    %v237 = vtanh.pop %v234
    %v238 = vld [vmem:[%s6] sm:$0xff]
    %v239 = vld [vmem:[%s6 + $0x8] sm:$0xff]
    %v240 = vld [vmem:[%s6 + $0x10] sm:$0xff]
    %v241 = vld [vmem:[%s6 + $0x18] sm:$0xff]
    %v242 = vld [vmem:[%s6 + $0x20] sm:$0xff]
    %v243 = vld [vmem:[%s6 + $0x28] sm:$0xff]
    %v244 = vld [vmem:[%s6 + $0x30] sm:$0xff]
    %v245 = vld [vmem:[%s6 + $0x38] sm:$0xff]
    %v246 = vld [vmem:[%s6 + $0x40] sm:$0xff]
    %v247 = vld [vmem:[%s6 + $0x48] sm:$0xff]
    %v248 = vld [vmem:[%s6 + $0x50] sm:$0xff]
    %v249 = vld [vmem:[%s6 + $0x58] sm:$0xff]
    %v250 = vld [vmem:[%s6 + $0x60] sm:$0xff]
    %v251 = vld [vmem:[%s6 + $0x68] sm:$0xff]
    %v252 = vld [vmem:[%s6 + $0x70] sm:$0xff]
    %v253 = vld [vmem:[%s6 + $0x78] sm:$0xff]
    %v254 = vld [vmem:[%s7] sm:$0x1]
    %v256 = vlaneseq
    %v257 = vshrl.u32 %v256, 7
    %v258 = vsub.s32 0, %v257
    %v259 = vrot.slane %v254, %v258
    %261 = vmatprep.subr.mxu0 0.0
    %262 = vmatpush1.msra.mxu0 %v253
    %263 = vmatprep.subr.mxu0 0.0
    %264 = vmatpush1.msra.mxu0 %v252
    %265 = vmatprep.subr.mxu0 0.0
    %266 = vmatpush1.msra.mxu0 %v251
    %267 = vmatprep.subr.mxu0 0.0
    %268 = vmatpush1.msra.mxu0 %v250
    %269 = vmatprep.subr.mxu0 0.0
    %270 = vmatpush1.msra.mxu0 %v249
    %271 = vmatprep.subr.mxu0 0.0
    %272 = vmatpush1.msra.mxu0 %v248
    %273 = vmatprep.subr.mxu0 0.0
    %274 = vmatpush1.msra.mxu0 %v247
    %275 = vmatprep.subr.mxu0 0.0
    %276 = vmatpush1.msra.mxu0 %v246
    %277 = vmatprep.subr.mxu0 0.0
    %278 = vmatpush1.msra.mxu0 %v245
    %279 = vmatprep.subr.mxu0 0.0
    %280 = vmatpush1.msra.mxu0 %v244
    %281 = vmatprep.subr.mxu0 0.0
    %282 = vmatpush1.msra.mxu0 %v243
    %283 = vmatprep.subr.mxu0 0.0
    %284 = vmatpush1.msra.mxu0 %v242
    %285 = vmatprep.subr.mxu0 0.0
    %286 = vmatpush1.msra.mxu0 %v241
    %287 = vmatprep.subr.mxu0 0.0
    %288 = vmatpush1.msra.mxu0 %v240
    %289 = vmatprep.subr.mxu0 0.0
    %290 = vmatpush1.msra.mxu0 %v239
    %291 = vmatprep.subr.mxu0 0.0
    %292 = vmatpush1.msra.mxu0 %v238
    %293 = vmatprep.subr.mxu0 0.0
    %294 = vmatpush2.msra.mxu0 0.0
    %295 = vmatprep.subr.mxu0 0.0
    %296 = vmatpush2.msra.mxu0 0.0
    %297 = vmatprep.subr.mxu0 0.0
    %298 = vmatpush2.msra.mxu0 0.0
    %299 = vmatprep.subr.mxu0 0.0
    %300 = vmatpush2.msra.mxu0 0.0
    %301 = vmatprep.subr.mxu0 0.0
    %302 = vmatpush2.msra.mxu0 0.0
    %303 = vmatprep.subr.mxu0 0.0
    %304 = vmatpush2.msra.mxu0 0.0
    %305 = vmatprep.subr.mxu0 0.0
    %306 = vmatpush2.msra.mxu0 0.0
    %307 = vmatprep.subr.mxu0 0.0
    %308 = vmatpush2.msra.mxu0 0.0
    %309 = vmatprep.subr.mxu0 0.0
    %310 = vmatpush2.msra.mxu0 0.0
    %311 = vmatprep.subr.mxu0 0.0
    %312 = vmatpush2.msra.mxu0 0.0
    %313 = vmatprep.subr.mxu0 0.0
    %314 = vmatpush2.msra.mxu0 0.0
    %315 = vmatprep.subr.mxu0 0.0
    %316 = vmatpush2.msra.mxu0 0.0
    %317 = vmatprep.subr.mxu0 0.0
    %318 = vmatpush2.msra.mxu0 0.0
    %319 = vmatprep.subr.mxu0 0.0
    %320 = vmatpush2.msra.mxu0 0.0
    %321 = vmatprep.subr.mxu0 0.0
    %322 = vmatpush2.msra.mxu0 0.0
    %323 = vmatprep.subr.mxu0 0.0
    %324 = vmatpush2.msra.mxu0 0.0
    %325 = vmatprep.mubr.f32.mxu0 0.0
    %326 = vmatmul.mubr.f32.gmra.mxu0 %v237
    %v327 = vpop.f32.mrf.mxu0
    %v328 = vadd.f32 %v259, %v327
    %v329 = vpop.f32.mrf.mxu0
    %330 = vdwg.mxu0
    %v331 = vtanh.pop %v328
    %v332 = vstv %s56
    %v333 = vmul.f32 %v332, %v331
    %vm334 = vcmask 31744
    %335 = vst.msk [vmem:[%s8] sm:$0xff] %vm334, %v333
    // Predicated region
    $region42: #{tpu_custom_call.1} parent=1 // pred_check
      _
    $region43: #{tpu_custom_call.1} parent=1 // pred_check_branch
      %337 = sbr.rel (0) target = $region45
    $region44: #{tpu_custom_call.1} parent=1 // pred_region
      _
    $region45: #{tpu_custom_call.1} parent=1 // pred_fallthru
      _
    // Predicated region
    $region46: #{tpu_custom_call.1} parent=1 // pred_check
      _
    $region47: #{tpu_custom_call.1} parent=1 // pred_check_branch
      %339 = sbr.rel (0) target = $region49
    $region48: #{tpu_custom_call.1} parent=1 // pred_region
      _
    $region49: #{tpu_custom_call.1} parent=1 // pred_fallthru
      _
    %340 = vsyncpa [#allocation4], 1
    %341 = vsyncpa [#allocation6], 1

</llo_original>
